<compile_context>
chip_gen: v7x
topology: tpu7x:2x2x1
jax: 0.10.0
libtpu: 0.0.40
codegen_flags: <defaults>
</compile_context>

<pallas_src>
import jax
import jax.numpy as jnp
from jax.experimental import pallas as pl
from jax.experimental.pallas import tpu as pltpu


OUT_W = 8  # narrow output slab; column 0 = Q1, column 1 = Q2, rest zero


def _round_up(x, m):
    return ((x + m - 1) // m) * m


def _cdiv(a, b):
    return -(-a // b)


def _tensorcores_per_chip():
    """Best-effort TensorCore-per-chip count (v7x / megacore => 2)."""
    try:
        kind = jax.devices()[0].device_kind.lower()
    except Exception:
        return 1
    if "v7" in kind or "7x" in kind:
        return 2
    if "v5p" in kind:
        return 2
    if "v4" in kind:
        return 2  # megacore: parallel grid axes are sharded across the 2 TCs
    return 1


def _twinned_q_kernel(s_ref, a_ref, w1s_ref, w1a_ref, w2_ref, w3_ref,
                      b12_ref, b3_ref, q_ref):
    # Layer 1: implicit concat(states, actions) via row-split W1; both heads
    # fused along the output columns.  bf16 operands, f32 MXU accumulation.
    h = (jnp.dot(s_ref[...], w1s_ref[...], preferred_element_type=jnp.float32)
         + jnp.dot(a_ref[...], w1a_ref[...], preferred_element_type=jnp.float32))
    b12 = b12_ref[...]                                  # (2, Hp) f32 bias slab
    h = jnp.maximum(h + b12[0:1, :], 0.0).astype(jnp.bfloat16)

    # Layer 2: block-diagonal fused weight (both heads at once).
    h = jnp.dot(h, w2_ref[...], preferred_element_type=jnp.float32)
    h = jnp.maximum(h + b12[1:2, :], 0.0).astype(jnp.bfloat16)

    # Layer 3: narrow (Hp, OUT_W) head; col 0 = Q1, col 1 = Q2.
    q = jnp.dot(h, w3_ref[...], preferred_element_type=jnp.float32) + b3_ref[...]
    q_ref[...] = q.astype(q_ref.dtype)


def pack_twinned_params(params_q1, params_q2, num_inputs, num_actions,
                        weight_dtype=jnp.bfloat16):
    """Pack the 12 per-head tensors into 6 fused, MXU/lane-friendly buffers."""
    assert len(params_q1) == 6 and len(params_q2) == 6, \
        "packing assumes exactly two hidden layers per head"
    w1a_, b1a, w2a_, b2a, w3a_, b3a = params_q1
    w1b_, b1b, w2b_, b2b, w3b_, b3b = params_q2
    D, H1 = w1a_.shape
    H2 = w2a_.shape[1]
    assert D == num_inputs + num_actions
    assert w1b_.shape == (D, H1) and w2a_.shape == (H1, H2) and w2b_.shape == (H1, H2)
    assert w3a_.shape == (H2, 1) and w3b_.shape == (H2, 1), "out_dim must be 1"

    Hp = _round_up(2 * max(H1, H2), 128)   # fused hidden width, lane-full
    assert Hp >= OUT_W and Hp >= 2 * H1 and Hp >= 2 * H2

    z = lambda shape: jnp.zeros(shape, jnp.float32)

    # First layer, split by input rows; heads fused along columns.
    w1s = (z((num_inputs, Hp))
           .at[:, 0:H1].set(w1a_[:num_inputs])
           .at[:, H1:2 * H1].set(w1b_[:num_inputs]))
    w1a = (z((num_actions, Hp))
           .at[:, 0:H1].set(w1a_[num_inputs:])
           .at[:, H1:2 * H1].set(w1b_[num_inputs:]))

    # Second layer: block-diagonal.
    # TODO(synk): for hidden widths > ~128 switch to two sequential HxH dots
    # (stacked (2,H,H) weights) instead of the 2Hx2H block-diagonal layout.
    w2 = (z((Hp, Hp))
          .at[0:H1, 0:H2].set(w2a_)
          .at[H1:2 * H1, H2:2 * H2].set(w2b_))

    # Third layer: col 0 = Q1, col 1 = Q2, padded to OUT_W lanes.
    w3 = (z((Hp, OUT_W))
          .at[0:H2, 0:1].set(w3a_)
          .at[H2:2 * H2, 1:2].set(w3b_))

    # Bias slabs (kept in f32): row 0 = layer1, row 1 = layer2; b3 separate.
    b12 = z((2, Hp))
    b12 = b12.at[0, 0:H1].set(b1a.reshape(-1)).at[0, H1:2 * H1].set(b1b.reshape(-1))
    b12 = b12.at[1, 0:H2].set(b2a.reshape(-1)).at[1, H2:2 * H2].set(b2b.reshape(-1))
    b3 = z((1, OUT_W)).at[0, 0].set(b3a.reshape(-1)[0]).at[0, 1].set(b3b.reshape(-1)[0])

    cast = lambda w: w.astype(weight_dtype)
    return (cast(w1s), cast(w1a), cast(w2), cast(w3), b12, b3)


def sac_twinned_q_forward(states, actions, packed_params, *, max_block_b=2048):
    """states: (B, num_inputs), actions: (B, num_actions) -> (q1, q2), each (B, 1)."""
    w1s, w1a, w2, w3, b12, b3 = packed_params
    B, NI = states.shape
    NA = actions.shape[1]
    Hp = w2.shape[0]
    in_dtype = w1s.dtype

    # --- generation-aware batch tiling -------------------------------------
    n_cores = _tensorcores_per_chip()
    # As few grid steps as possible (per-step overhead ~0.35us on single-TC
    # v5e/v6e), but at least n_cores steps when each tile still gets >=256
    # rows, so a v7x / megacore second TensorCore is not left idle.
    n_steps = max(1, _cdiv(B, max_block_b))
    if n_cores > 1 and B >= 256 * n_cores:
        n_steps = max(n_steps, n_cores)
    TB = _round_up(_cdiv(B, n_steps), 16)   # 16: bf16 sublane packing
    B_pad = _round_up(B, TB)

    if B_pad != B:
        pad = ((0, B_pad - B), (0, 0))
        states = jnp.pad(states, pad)
        actions = jnp.pad(actions, pad)
    states = states.astype(in_dtype)
    actions = actions.astype(in_dtype)

    grid = (B_pad // TB,)

    def build_and_call(use_buffered):
        def resident(shape):
            # Constant-index weight blocks never need double-buffering.
            if use_buffered:
                return pl.BlockSpec(shape, lambda i: (0, 0),
                                    pipeline_mode=pl.Buffered(1))
            return pl.BlockSpec(shape, lambda i: (0, 0))

        return pl.pallas_call(
            _twinned_q_kernel,
            out_shape=jax.ShapeDtypeStruct((B_pad, OUT_W), jnp.float32),
            grid=grid,
            in_specs=[
                pl.BlockSpec((TB, NI), lambda i: (i, 0)),   # states tile
                pl.BlockSpec((TB, NA), lambda i: (i, 0)),   # actions tile
                resident((NI, Hp)),                         # W1 (state rows)
                resident((NA, Hp)),                         # W1 (action rows)
                resident((Hp, Hp)),                         # W2 block-diag
                resident((Hp, OUT_W)),                      # W3
                resident((2, Hp)),                          # layer1/2 biases
                resident((1, OUT_W)),                       # layer3 biases
            ],
            out_specs=pl.BlockSpec((TB, OUT_W), lambda i: (i, 0)),
            compiler_params=pltpu.CompilerParams(
                dimension_semantics=("parallel",),          # megacore / v7x 2nd TC
            ),
        )(states, actions, w1s, w1a, w2, w3, b12, b3)

    try:
        q = build_and_call(use_buffered=True)
    except Exception:
        # Fallback if this Pallas version does not accept pipeline_mode on
        # pallas_call BlockSpecs (weights are tiny, double-buffering is fine).
        q = build_and_call(use_buffered=False)

    q1 = q[:B, 0:1]
    q2 = q[:B, 1:2]
    return q1, q2


def _xavier_uniform(key, fan_in, fan_out, dtype=jnp.float32):
    limit = jnp.sqrt(6.0 / (fan_in + fan_out))
    return jax.random.uniform(key, (fan_in, fan_out), dtype, -limit, limit)


def init_q_params(key, in_dim, hidden_units, out_dim=1):
    dims = [in_dim] + list(hidden_units) + [out_dim]
    params = []
    for i in range(len(dims) - 1):
        key, wk = jax.random.split(key)
        w = _xavier_uniform(wk, dims[i], dims[i + 1])   # (in, out), pre-transposed
        bias = jnp.zeros((1, dims[i + 1]), jnp.float32)
        params += [w, bias]
    return params


if __name__ == "__main__":
    # Small, forward-consistent shapes.
    batch = 8
    num_inputs = 24
    num_actions = 8
    hidden_units = [32, 32]

    key = jax.random.PRNGKey(0)
    k_s, k_a, k_q1, k_q2 = jax.random.split(key, 4)

    states = jax.random.normal(k_s, (batch, num_inputs), jnp.float32)
    actions = jax.random.normal(k_a, (batch, num_actions), jnp.float32)

    params_q1 = init_q_params(k_q1, num_inputs + num_actions, hidden_units)
    params_q2 = init_q_params(k_q2, num_inputs + num_actions, hidden_units)

    packed = pack_twinned_params(params_q1, params_q2, num_inputs, num_actions)

    q1, q2 = sac_twinned_q_forward(states, actions, packed)
    jax.block_until_ready((q1, q2))

    # References.
    x = jnp.concatenate([states, actions], axis=1)

    def ref_mlp(x, p, cast_bf16):
        w1, b1, w2, b2, w3, b3 = p

        def mm(a, w):
            if cast_bf16:
                return jnp.dot(a.astype(jnp.bfloat16), w.astype(jnp.bfloat16),
                               preferred_element_type=jnp.float32)
            return jnp.dot(a, w, precision=jax.lax.Precision.HIGHEST)

        h = jnp.maximum(mm(x, w1) + b1, 0.0)
        h = jnp.maximum(mm(h, w2) + b2, 0.0)
        return mm(h, w3) + b3

    # Tight check against a reference that models the kernel arithmetic
    # (bf16 weights/activations, f32 accumulation).
    r1_bf = ref_mlp(x, params_q1, cast_bf16=True)
    r2_bf = ref_mlp(x, params_q2, cast_bf16=True)
    # Loose sanity check against the full-f32 PyTorch-equivalent math.
    r1_f32 = ref_mlp(x, params_q1, cast_bf16=False)
    r2_f32 = ref_mlp(x, params_q2, cast_bf16=False)

    assert q1.shape == (batch, 1) and q2.shape == (batch, 1)
    assert jnp.allclose(q1, r1_bf, atol=1e-3, rtol=1e-3), "Q1 mismatch (bf16 model)"
    assert jnp.allclose(q2, r2_bf, atol=1e-3, rtol=1e-3), "Q2 mismatch (bf16 model)"
    assert jnp.allclose(q1, r1_f32, atol=1e-1, rtol=1e-1), "Q1 mismatch (f32 ref)"
    assert jnp.allclose(q2, r2_f32, atol=1e-1, rtol=1e-1), "Q2 mismatch (f32 ref)"

    # TODO(synk): BaseNetwork.save/load (torch state_dict persistence) has no
    # kernel equivalent and is intentionally omitted.
    print("KERNEL_OK")
</pallas_src>

<mosaic_0001>
module attributes {stable_mosaic.version = 11 : i64} {
  func.func @_twinned_q_kernel(%arg0: i32, %arg1: memref<16x24xbf16, #tpu.memory_space<vmem>>, %arg2: memref<16x8xbf16, #tpu.memory_space<vmem>>, %arg3: memref<24x128xbf16, #tpu.memory_space<vmem>>, %arg4: memref<8x128xbf16, #tpu.memory_space<vmem>>, %arg5: memref<128x128xbf16, #tpu.memory_space<vmem>>, %arg6: memref<128x8xbf16, #tpu.memory_space<vmem>>, %arg7: memref<2x128xf32, #tpu.memory_space<vmem>>, %arg8: memref<1x8xf32, #tpu.memory_space<vmem>>, %arg9: memref<16x8xf32, #tpu.memory_space<vmem>>) attributes {dimension_semantics = [#tpu.dimension_semantics<parallel>], iteration_bounds = array<i64: 1>, scalar_prefetch = 0 : i64, scratch_operands = 0 : i64, tpu.core_type = #tpu.core_type<tc>, window_params = [{transform_indices = @transform_0, window_bounds = array<i64: 16, 24>}, {transform_indices = @transform_1, window_bounds = array<i64: 16, 8>}, {pipeline_mode = #tpu.pipeline_mode<synchronous>, transform_indices = @transform_2, window_bounds = array<i64: 24, 128>}, {pipeline_mode = #tpu.pipeline_mode<synchronous>, transform_indices = @transform_3, window_bounds = array<i64: 8, 128>}, {pipeline_mode = #tpu.pipeline_mode<synchronous>, transform_indices = @transform_4, window_bounds = array<i64: 128, 128>}, {pipeline_mode = #tpu.pipeline_mode<synchronous>, transform_indices = @transform_5, window_bounds = array<i64: 128, 8>}, {pipeline_mode = #tpu.pipeline_mode<synchronous>, transform_indices = @transform_6, window_bounds = array<i64: 2, 128>}, {pipeline_mode = #tpu.pipeline_mode<synchronous>, transform_indices = @transform_7, window_bounds = array<i64: 1, 8>}, {transform_indices = @transform_8, window_bounds = array<i64: 16, 8>}]} {
    %c0 = arith.constant 0 : index
    %c0_0 = arith.constant 0 : index
    %0 = vector.load %arg1[%c0, %c0_0] : memref<16x24xbf16, #tpu.memory_space<vmem>>, vector<16x24xbf16>
    %c0_1 = arith.constant 0 : index
    %c0_2 = arith.constant 0 : index
    %1 = vector.load %arg3[%c0_1, %c0_2] : memref<24x128xbf16, #tpu.memory_space<vmem>>, vector<24x128xbf16>
    %cst = arith.constant dense<0.000000e+00> : vector<16x128xf32>
    %2 = tpu.matmul %0, %1, %cst {dimension_numbers = #tpu.dot_dimension_numbers<[1], [0], [0], [1], [0, 0, 1, 1], [], []>} : vector<16x24xbf16>, vector<24x128xbf16>, vector<16x128xf32> -> vector<16x128xf32>
    %c0_3 = arith.constant 0 : index
    %c0_4 = arith.constant 0 : index
    %3 = vector.load %arg2[%c0_3, %c0_4] : memref<16x8xbf16, #tpu.memory_space<vmem>>, vector<16x8xbf16>
    %c0_5 = arith.constant 0 : index
    %c0_6 = arith.constant 0 : index
    %4 = vector.load %arg4[%c0_5, %c0_6] : memref<8x128xbf16, #tpu.memory_space<vmem>>, vector<8x128xbf16>
    %cst_7 = arith.constant dense<0.000000e+00> : vector<16x128xf32>
    %5 = tpu.matmul %3, %4, %cst_7 {dimension_numbers = #tpu.dot_dimension_numbers<[1], [0], [0], [1], [0, 0, 1, 1], [], []>} : vector<16x8xbf16>, vector<8x128xbf16>, vector<16x128xf32> -> vector<16x128xf32>
    %6 = arith.addf %2, %5 : vector<16x128xf32>
    %c0_8 = arith.constant 0 : index
    %c0_9 = arith.constant 0 : index
    %7 = vector.load %arg7[%c0_8, %c0_9] : memref<2x128xf32, #tpu.memory_space<vmem>>, vector<2x128xf32>
    %8 = vector.extract_strided_slice %7 {offsets = [0, 0], sizes = [1, 128], strides = [1, 1]} : vector<2x128xf32> to vector<1x128xf32>
    %9 = vector.broadcast %8 : vector<1x128xf32> to vector<16x128xf32>
    %10 = arith.addf %6, %9 : vector<16x128xf32>
    %cst_10 = arith.constant 0.000000e+00 : f32
    %11 = vector.broadcast %cst_10 : f32 to vector<16x128xf32>
    %12 = arith.maximumf %10, %11 : vector<16x128xf32>
    %13 = arith.truncf %12 : vector<16x128xf32> to vector<16x128xbf16>
    %c0_11 = arith.constant 0 : index
    %c0_12 = arith.constant 0 : index
    %14 = vector.load %arg5[%c0_11, %c0_12] : memref<128x128xbf16, #tpu.memory_space<vmem>>, vector<128x128xbf16>
    %cst_13 = arith.constant dense<0.000000e+00> : vector<16x128xf32>
    %15 = tpu.matmul %13, %14, %cst_13 {dimension_numbers = #tpu.dot_dimension_numbers<[1], [0], [0], [1], [0, 0, 1, 1], [], []>} : vector<16x128xbf16>, vector<128x128xbf16>, vector<16x128xf32> -> vector<16x128xf32>
    %16 = vector.extract_strided_slice %7 {offsets = [1, 0], sizes = [1, 128], strides = [1, 1]} : vector<2x128xf32> to vector<1x128xf32>
    %17 = vector.broadcast %16 : vector<1x128xf32> to vector<16x128xf32>
    %18 = arith.addf %15, %17 : vector<16x128xf32>
    %cst_14 = arith.constant 0.000000e+00 : f32
    %19 = vector.broadcast %cst_14 : f32 to vector<16x128xf32>
    %20 = arith.maximumf %18, %19 : vector<16x128xf32>
    %21 = arith.truncf %20 : vector<16x128xf32> to vector<16x128xbf16>
    %c0_15 = arith.constant 0 : index
    %c0_16 = arith.constant 0 : index
    %22 = vector.load %arg6[%c0_15, %c0_16] : memref<128x8xbf16, #tpu.memory_space<vmem>>, vector<128x8xbf16>
    %cst_17 = arith.constant dense<0.000000e+00> : vector<16x8xf32>
    %23 = tpu.matmul %21, %22, %cst_17 {dimension_numbers = #tpu.dot_dimension_numbers<[1], [0], [0], [1], [0, 0, 1, 1], [], []>} : vector<16x128xbf16>, vector<128x8xbf16>, vector<16x8xf32> -> vector<16x8xf32>
    %c0_18 = arith.constant 0 : index
    %c0_19 = arith.constant 0 : index
    %24 = vector.load %arg8[%c0_18, %c0_19] : memref<1x8xf32, #tpu.memory_space<vmem>>, vector<1x8xf32>
    %25 = vector.broadcast %24 : vector<1x8xf32> to vector<16x8xf32>
    %26 = arith.addf %23, %25 : vector<16x8xf32>
    %c0_20 = arith.constant 0 : index
    %c0_21 = arith.constant 0 : index
    %27 = vector.load %arg9[%c0_20, %c0_21] : memref<16x8xf32, #tpu.memory_space<vmem>>, vector<16x8xf32>
    tpu.vector_store %arg9[%c0_20, %c0_21], %26 {strides = array<i32>} : memref<16x8xf32, #tpu.memory_space<vmem>>, vector<16x8xf32>,
    return
  }
  func.func @transform_0(%arg0: i32) -> (i32, i32) {
    %c0_i32 = arith.constant 0 : i32
    %c0_i32_0 = arith.constant 0 : i32
    return %arg0, %c0_i32 : i32, i32
  }
  func.func @transform_1(%arg0: i32) -> (i32, i32) {
    %c0_i32 = arith.constant 0 : i32
    %c0_i32_0 = arith.constant 0 : i32
    return %arg0, %c0_i32 : i32, i32
  }
  func.func @transform_2(%arg0: i32) -> (i32, i32) {
    %c0_i32 = arith.constant 0 : i32
    %c0_i32_0 = arith.constant 0 : i32
    %c0_i32_1 = arith.constant 0 : i32
    return %c0_i32, %c0_i32_0 : i32, i32
  }
  func.func @transform_3(%arg0: i32) -> (i32, i32) {
    %c0_i32 = arith.constant 0 : i32
    %c0_i32_0 = arith.constant 0 : i32
    %c0_i32_1 = arith.constant 0 : i32
    return %c0_i32, %c0_i32_0 : i32, i32
  }
  func.func @transform_4(%arg0: i32) -> (i32, i32) {
    %c0_i32 = arith.constant 0 : i32
    %c0_i32_0 = arith.constant 0 : i32
    %c0_i32_1 = arith.constant 0 : i32
    return %c0_i32, %c0_i32_0 : i32, i32
  }
  func.func @transform_5(%arg0: i32) -> (i32, i32) {
    %c0_i32 = arith.constant 0 : i32
    %c0_i32_0 = arith.constant 0 : i32
    %c0_i32_1 = arith.constant 0 : i32
    return %c0_i32, %c0_i32_0 : i32, i32
  }
  func.func @transform_6(%arg0: i32) -> (i32, i32) {
    %c0_i32 = arith.constant 0 : i32
    %c0_i32_0 = arith.constant 0 : i32
    %c0_i32_1 = arith.constant 0 : i32
    return %c0_i32, %c0_i32_0 : i32, i32
  }
  func.func @transform_7(%arg0: i32) -> (i32, i32) {
    %c0_i32 = arith.constant 0 : i32
    %c0_i32_0 = arith.constant 0 : i32
    %c0_i32_1 = arith.constant 0 : i32
    return %c0_i32, %c0_i32_0 : i32, i32
  }
  func.func @transform_8(%arg0: i32) -> (i32, i32) {
    %c0_i32 = arith.constant 0 : i32
    %c0_i32_0 = arith.constant 0 : i32
    return %arg0, %c0_i32 : i32, i32
  }
}

module attributes {stable_mosaic.version = 11 : i64} {
  func.func @_twinned_q_kernel(%arg0: i32, %arg1: memref<16x24xbf16, #tpu.memory_space<vmem>>, %arg2: memref<16x8xbf16, #tpu.memory_space<vmem>>, %arg3: memref<24x128xbf16, #tpu.memory_space<vmem>>, %arg4: memref<8x128xbf16, #tpu.memory_space<vmem>>, %arg5: memref<128x128xbf16, #tpu.memory_space<vmem>>, %arg6: memref<128x8xbf16, #tpu.memory_space<vmem>>, %arg7: memref<2x128xf32, #tpu.memory_space<vmem>>, %arg8: memref<1x8xf32, #tpu.memory_space<vmem>>, %arg9: memref<16x8xf32, #tpu.memory_space<vmem>>) attributes {dimension_semantics = [#tpu.dimension_semantics<parallel>], iteration_bounds = array<i64: 1>, scalar_prefetch = 0 : i64, scratch_operands = 0 : i64, tpu.core_type = #tpu.core_type<tc>, window_params = [{transform_indices = @transform_0, window_bounds = array<i64: 16, 24>}, {transform_indices = @transform_1, window_bounds = array<i64: 16, 8>}, {pipeline_mode = #tpu.pipeline_mode<synchronous>, transform_indices = @transform_2, window_bounds = array<i64: 24, 128>}, {pipeline_mode = #tpu.pipeline_mode<synchronous>, transform_indices = @transform_3, window_bounds = array<i64: 8, 128>}, {pipeline_mode = #tpu.pipeline_mode<synchronous>, transform_indices = @transform_4, window_bounds = array<i64: 128, 128>}, {pipeline_mode = #tpu.pipeline_mode<synchronous>, transform_indices = @transform_5, window_bounds = array<i64: 128, 8>}, {pipeline_mode = #tpu.pipeline_mode<synchronous>, transform_indices = @transform_6, window_bounds = array<i64: 2, 128>}, {pipeline_mode = #tpu.pipeline_mode<synchronous>, transform_indices = @transform_7, window_bounds = array<i64: 1, 8>}, {transform_indices = @transform_8, window_bounds = array<i64: 16, 8>}]} {
    %c0 = arith.constant 0 : index
    %c0_0 = arith.constant 0 : index
    %0 = vector.load %arg1[%c0, %c0_0] : memref<16x24xbf16, #tpu.memory_space<vmem>>, vector<16x24xbf16>
    %c0_1 = arith.constant 0 : index
    %c0_2 = arith.constant 0 : index
    %1 = vector.load %arg3[%c0_1, %c0_2] : memref<24x128xbf16, #tpu.memory_space<vmem>>, vector<24x128xbf16>
    %cst = arith.constant dense<0.000000e+00> : vector<16x128xf32>
    %2 = tpu.matmul %0, %1, %cst {dimension_numbers = #tpu.dot_dimension_numbers<[1], [0], [0], [1], [0, 0, 1, 1], [], []>} : vector<16x24xbf16>, vector<24x128xbf16>, vector<16x128xf32> -> vector<16x128xf32>
    %c0_3 = arith.constant 0 : index
    %c0_4 = arith.constant 0 : index
    %3 = vector.load %arg2[%c0_3, %c0_4] : memref<16x8xbf16, #tpu.memory_space<vmem>>, vector<16x8xbf16>
    %c0_5 = arith.constant 0 : index
    %c0_6 = arith.constant 0 : index
    %4 = vector.load %arg4[%c0_5, %c0_6] : memref<8x128xbf16, #tpu.memory_space<vmem>>, vector<8x128xbf16>
    %cst_7 = arith.constant dense<0.000000e+00> : vector<16x128xf32>
    %5 = tpu.matmul %3, %4, %cst_7 {dimension_numbers = #tpu.dot_dimension_numbers<[1], [0], [0], [1], [0, 0, 1, 1], [], []>} : vector<16x8xbf16>, vector<8x128xbf16>, vector<16x128xf32> -> vector<16x128xf32>
    %6 = arith.addf %2, %5 : vector<16x128xf32>
    %c0_8 = arith.constant 0 : index
    %c0_9 = arith.constant 0 : index
    %7 = vector.load %arg7[%c0_8, %c0_9] : memref<2x128xf32, #tpu.memory_space<vmem>>, vector<2x128xf32>
    %8 = vector.extract_strided_slice %7 {offsets = [0, 0], sizes = [1, 128], strides = [1, 1]} : vector<2x128xf32> to vector<1x128xf32>
    %9 = vector.broadcast %8 : vector<1x128xf32> to vector<16x128xf32>
    %10 = arith.addf %6, %9 : vector<16x128xf32>
    %cst_10 = arith.constant 0.000000e+00 : f32
    %11 = vector.broadcast %cst_10 : f32 to vector<16x128xf32>
    %12 = arith.maximumf %10, %11 : vector<16x128xf32>
    %13 = arith.truncf %12 : vector<16x128xf32> to vector<16x128xbf16>
    %c0_11 = arith.constant 0 : index
    %c0_12 = arith.constant 0 : index
    %14 = vector.load %arg5[%c0_11, %c0_12] : memref<128x128xbf16, #tpu.memory_space<vmem>>, vector<128x128xbf16>
    %cst_13 = arith.constant dense<0.000000e+00> : vector<16x128xf32>
    %15 = tpu.matmul %13, %14, %cst_13 {dimension_numbers = #tpu.dot_dimension_numbers<[1], [0], [0], [1], [0, 0, 1, 1], [], []>} : vector<16x128xbf16>, vector<128x128xbf16>, vector<16x128xf32> -> vector<16x128xf32>
    %16 = vector.extract_strided_slice %7 {offsets = [1, 0], sizes = [1, 128], strides = [1, 1]} : vector<2x128xf32> to vector<1x128xf32>
    %17 = vector.broadcast %16 : vector<1x128xf32> to vector<16x128xf32>
    %18 = arith.addf %15, %17 : vector<16x128xf32>
    %cst_14 = arith.constant 0.000000e+00 : f32
    %19 = vector.broadcast %cst_14 : f32 to vector<16x128xf32>
    %20 = arith.maximumf %18, %19 : vector<16x128xf32>
    %21 = arith.truncf %20 : vector<16x128xf32> to vector<16x128xbf16>
    %c0_15 = arith.constant 0 : index
    %c0_16 = arith.constant 0 : index
    %22 = vector.load %arg6[%c0_15, %c0_16] : memref<128x8xbf16, #tpu.memory_space<vmem>>, vector<128x8xbf16>
    %cst_17 = arith.constant dense<0.000000e+00> : vector<16x8xf32>
    %23 = tpu.matmul %21, %22, %cst_17 {dimension_numbers = #tpu.dot_dimension_numbers<[1], [0], [0], [1], [0, 0, 1, 1], [], []>} : vector<16x128xbf16>, vector<128x8xbf16>, vector<16x8xf32> -> vector<16x8xf32>
    %c0_18 = arith.constant 0 : index
    %c0_19 = arith.constant 0 : index
    %24 = vector.load %arg8[%c0_18, %c0_19] : memref<1x8xf32, #tpu.memory_space<vmem>>, vector<1x8xf32>
    %25 = vector.broadcast %24 : vector<1x8xf32> to vector<16x8xf32>
    %26 = arith.addf %23, %25 : vector<16x8xf32>
    %c0_20 = arith.constant 0 : index
    %c0_21 = arith.constant 0 : index
    %27 = vector.load %arg9[%c0_20, %c0_21] : memref<16x8xf32, #tpu.memory_space<vmem>>, vector<16x8xf32>
    tpu.vector_store %arg9[%c0_20, %c0_21], %26 {strides = array<i32>} : memref<16x8xf32, #tpu.memory_space<vmem>>, vector<16x8xf32>,
    return
  }
  func.func @transform_0(%arg0: i32) -> (i32, i32) {
    %c0_i32 = arith.constant 0 : i32
    %c0_i32_0 = arith.constant 0 : i32
    return %arg0, %c0_i32 : i32, i32
  }
  func.func @transform_1(%arg0: i32) -> (i32, i32) {
    %c0_i32 = arith.constant 0 : i32
    %c0_i32_0 = arith.constant 0 : i32
    return %arg0, %c0_i32 : i32, i32
  }
  func.func @transform_2(%arg0: i32) -> (i32, i32) {
    %c0_i32 = arith.constant 0 : i32
    %c0_i32_0 = arith.constant 0 : i32
    %c0_i32_1 = arith.constant 0 : i32
    return %c0_i32, %c0_i32_0 : i32, i32
  }
  func.func @transform_3(%arg0: i32) -> (i32, i32) {
    %c0_i32 = arith.constant 0 : i32
    %c0_i32_0 = arith.constant 0 : i32
    %c0_i32_1 = arith.constant 0 : i32
    return %c0_i32, %c0_i32_0 : i32, i32
  }
  func.func @transform_4(%arg0: i32) -> (i32, i32) {
    %c0_i32 = arith.constant 0 : i32
    %c0_i32_0 = arith.constant 0 : i32
    %c0_i32_1 = arith.constant 0 : i32
    return %c0_i32, %c0_i32_0 : i32, i32
  }
  func.func @transform_5(%arg0: i32) -> (i32, i32) {
    %c0_i32 = arith.constant 0 : i32
    %c0_i32_0 = arith.constant 0 : i32
    %c0_i32_1 = arith.constant 0 : i32
    return %c0_i32, %c0_i32_0 : i32, i32
  }
  func.func @transform_6(%arg0: i32) -> (i32, i32) {
    %c0_i32 = arith.constant 0 : i32
    %c0_i32_0 = arith.constant 0 : i32
    %c0_i32_1 = arith.constant 0 : i32
    return %c0_i32, %c0_i32_0 : i32, i32
  }
  func.func @transform_7(%arg0: i32) -> (i32, i32) {
    %c0_i32 = arith.constant 0 : i32
    %c0_i32_0 = arith.constant 0 : i32
    %c0_i32_1 = arith.constant 0 : i32
    return %c0_i32, %c0_i32_0 : i32, i32
  }
  func.func @transform_8(%arg0: i32) -> (i32, i32) {
    %c0_i32 = arith.constant 0 : i32
    %c0_i32_0 = arith.constant 0 : i32
    return %arg0, %c0_i32 : i32, i32
  }
}

</mosaic_0001>

<llo_original>
// kernel: tpu_custom_call.1
$region0: #{tpu_custom_call.1}
  #allocation0 [shape = 'u32[]', space=smem, size = 0x4, offset = 0x4, fixed_abs, tag = 'smem constant byte address 0x4 - core index']
  #allocation1 [shape = 'u32[144,128]{1,0:T(1,128)}', space=vmem, size = 0x12000, scoped, tag = 'internal scratch']
  %s0 = inlined_call_operand.vmem [shape: bf16[16,24], index: 0, kind: input, shape index: {}]
  %s1 = inlined_call_operand.vmem [shape: bf16[16,8], index: 1, kind: input, shape index: {}]
  %s2 = inlined_call_operand.vmem [shape: bf16[24,128], index: 2, kind: input, shape index: {}]
  %s3 = inlined_call_operand.vmem [shape: bf16[8,128], index: 3, kind: input, shape index: {}]
  %s4 = inlined_call_operand.vmem [shape: bf16[128,128], index: 4, kind: input, shape index: {}]
  %s5 = inlined_call_operand.vmem [shape: bf16[128,8], index: 5, kind: input, shape index: {}]
  %s6 = inlined_call_operand.vmem [shape: f32[2,128], index: 6, kind: input, shape index: {}]
  %s7 = inlined_call_operand.vmem [shape: f32[1,8], index: 7, kind: input, shape index: {}]
  %s8 = inlined_call_operand.vmem [shape: f32[16,8], index: 8, kind: output, shape index: {}]
  %s9 = sld [smem:[#allocation0]]
  $region42: #{tpu_custom_call.1} parent=0
    _
  %s11 = ssub.s32 1, %s9
  %s12 = scalar_select 0, %s11, %s9
  // Predicated region
  $region2: #{tpu_custom_call.1} parent=0 // pred_check
    _
  $region3: #{tpu_custom_call.1} parent=0 // pred_check_branch
    %14 = sbr.rel (0) target = $region5
  $region4: #{tpu_custom_call.1} parent=0 // pred_region
    _
  $region5: #{tpu_custom_call.1} parent=0 // pred_fallthru
    _
  // Predicated region
  $region6: #{tpu_custom_call.1} parent=0 // pred_check
    _
  $region7: #{tpu_custom_call.1} parent=0 // pred_check_branch
    %16 = sbr.rel (0) target = $region9
  $region8: #{tpu_custom_call.1} parent=0 // pred_region
    _
  $region9: #{tpu_custom_call.1} parent=0 // pred_fallthru
    _
  // Predicated region
  $region10: #{tpu_custom_call.1} parent=0 // pred_check
    _
  $region11: #{tpu_custom_call.1} parent=0 // pred_check_branch
    %18 = sbr.rel (0) target = $region13
  $region12: #{tpu_custom_call.1} parent=0 // pred_region
    _
  $region13: #{tpu_custom_call.1} parent=0 // pred_fallthru
    _
  // Predicated region
  $region14: #{tpu_custom_call.1} parent=0 // pred_check
    _
  $region15: #{tpu_custom_call.1} parent=0 // pred_check_branch
    %20 = sbr.rel (0) target = $region17
  $region16: #{tpu_custom_call.1} parent=0 // pred_region
    _
  $region17: #{tpu_custom_call.1} parent=0 // pred_fallthru
    _
  // Predicated region
  $region18: #{tpu_custom_call.1} parent=0 // pred_check
    _
  $region19: #{tpu_custom_call.1} parent=0 // pred_check_branch
    %22 = sbr.rel (0) target = $region21
  $region20: #{tpu_custom_call.1} parent=0 // pred_region
    _
  $region21: #{tpu_custom_call.1} parent=0 // pred_fallthru
    _
  // Predicated region
  $region22: #{tpu_custom_call.1} parent=0 // pred_check
    _
  $region23: #{tpu_custom_call.1} parent=0 // pred_check_branch
    %24 = sbr.rel (0) target = $region25
  $region24: #{tpu_custom_call.1} parent=0 // pred_region
    _
  $region25: #{tpu_custom_call.1} parent=0 // pred_fallthru
    _
  // Predicated region
  $region26: #{tpu_custom_call.1} parent=0 // pred_check
    _
  $region27: #{tpu_custom_call.1} parent=0 // pred_check_branch
    %26 = sbr.rel (0) target = $region29
  $region28: #{tpu_custom_call.1} parent=0 // pred_region
    _
  $region29: #{tpu_custom_call.1} parent=0 // pred_fallthru
    _
  // Predicated region
  $region30: #{tpu_custom_call.1} parent=0 // pred_check
    _
  $region31: #{tpu_custom_call.1} parent=0 // pred_check_branch
    %28 = sbr.rel (0) target = $region33
  $region32: #{tpu_custom_call.1} parent=0 // pred_region
    _
  $region33: #{tpu_custom_call.1} parent=0 // pred_fallthru
    _
  %v30 = vld [vmem:[%s0] sm:$0xf]
  %v31 = vld [vmem:[%s0 + $0x4] sm:$0xf]
  %v32 = vld [vmem:[%s2] sm:$0xf]
  %v33 = vld [vmem:[%s2 + $0x4] sm:$0xf]
  %v34 = vld [vmem:[%s2 + $0x8] sm:$0xf]
  %v35 = vld [vmem:[%s1] sm:$0xf]
  %v36 = vld [vmem:[%s1 + $0x4] sm:$0xf]
  %v37 = vld [vmem:[%s3] sm:$0xf]
  %v40 = vunpack.c.l.b16 %v35
  %v41 = vunpack.c.l.b16 %v36
  %v42 = vpack.c.b16 %v41, %v40
  %vm43 = vcmask 64512
  %v45 = vsel %vm43, %v42, 0
  %vm47 = vcmask 1043456
  %v49 = vsel %vm47, %v37, 0
  %51 = vmatprep.subr.bf16.mxu0 0
  %52 = vmatpush1.bf16.msra.mxu0 %v49
  %53 = vmatprep.subr.bf16.mxu0 0
  %54 = vmatpush1.bf16.msra.mxu0 0
  %55 = vmatprep.subr.bf16.mxu0 0
  %56 = vmatpush1.bf16.msra.mxu0 0
  %57 = vmatprep.subr.bf16.mxu0 0
  %58 = vmatpush1.bf16.msra.mxu0 0
  %59 = vmatprep.subr.bf16.mxu0 0
  %60 = vmatpush1.bf16.msra.mxu0 0
  %61 = vmatprep.subr.bf16.mxu0 0
  %62 = vmatpush1.bf16.msra.mxu0 0
  %63 = vmatprep.subr.bf16.mxu0 0
  %64 = vmatpush1.bf16.msra.mxu0 0
  %65 = vmatprep.subr.bf16.mxu0 0
  %66 = vmatpush1.bf16.msra.mxu0 0
  %67 = vmatprep.subr.bf16.mxu0 0
  %68 = vmatpush1.bf16.msra.mxu0 0
  %69 = vmatprep.subr.bf16.mxu0 0
  %70 = vmatpush1.bf16.msra.mxu0 0
  %71 = vmatprep.subr.bf16.mxu0 0
  %72 = vmatpush1.bf16.msra.mxu0 0
  %73 = vmatprep.subr.bf16.mxu0 0
  %74 = vmatpush1.bf16.msra.mxu0 0
  %75 = vmatprep.subr.bf16.mxu0 0
  %76 = vmatpush1.bf16.msra.mxu0 0
  %77 = vmatprep.subr.bf16.mxu0 0
  %78 = vmatpush1.bf16.msra.mxu0 0
  %79 = vmatprep.subr.bf16.mxu0 0
  %80 = vmatpush1.bf16.msra.mxu0 0
  %81 = vmatprep.subr.bf16.mxu0 0
  %82 = vmatpush1.bf16.msra.mxu0 0
  %83 = vmatprep.mubr.bf16.mxu0 0
  %84 = vmatmul.mubr.bf16.gmra.mrb[0].mxu0 %v45
  %v85 = vpop.f32.mrb[0].mxu0
  %v86 = vadd.f32 0.0, %v85
  %v87 = vpop.f32.mrb[0].mxu0
  %v88 = vpop.f32.mrb[0].mxu0
  %v89 = vadd.f32 0.0, %v88
  %v90 = vpop.f32.mrb[0].mxu0
  %91 = vdwg.mxu0
  %v94 = vunpack.c.l.b16 %v30
  %v95 = vunpack.c.l.b16 %v31
  %v96 = vpack.c.b16 %v95, %v94
  %v100 = vunpack.c.l.b16 %v32
  %v101 = vunpack.c.l.b16 %v33
  %v102 = vunpack.c.l.b16 %v34
  %v103 = vpack.c.b16 %v101, %v100
  %v104 = vpack.c.b16 %v102, %v102
  %vm106 = vcmask 195584
  %v108 = vsel %vm106, %v96, 0
  %v111 = vsel %vm47, %v104, 0
  %113 = vmatprep.subr.bf16.mxu0 0
  %114 = vmatpush1.bf16.msra.mxu0 %v103
  %115 = vmatprep.subr.bf16.mxu0 0
  %116 = vmatpush1.bf16.msra.mxu0 %v111
  %117 = vmatprep.subr.bf16.mxu0 0
  %118 = vmatpush1.bf16.msra.mxu0 0
  %119 = vmatprep.subr.bf16.mxu0 0
  %120 = vmatpush1.bf16.msra.mxu0 0
  %121 = vmatprep.subr.bf16.mxu0 0
  %122 = vmatpush1.bf16.msra.mxu0 0
  %123 = vmatprep.subr.bf16.mxu0 0
  %124 = vmatpush1.bf16.msra.mxu0 0
  %125 = vmatprep.subr.bf16.mxu0 0
  %126 = vmatpush1.bf16.msra.mxu0 0
  %127 = vmatprep.subr.bf16.mxu0 0
  %128 = vmatpush1.bf16.msra.mxu0 0
  %129 = vmatprep.subr.bf16.mxu0 0
  %130 = vmatpush1.bf16.msra.mxu0 0
  %131 = vmatprep.subr.bf16.mxu0 0
  %132 = vmatpush1.bf16.msra.mxu0 0
  %133 = vmatprep.subr.bf16.mxu0 0
  %134 = vmatpush1.bf16.msra.mxu0 0
  %135 = vmatprep.subr.bf16.mxu0 0
  %136 = vmatpush1.bf16.msra.mxu0 0
  %137 = vmatprep.subr.bf16.mxu0 0
  %138 = vmatpush1.bf16.msra.mxu0 0
  %139 = vmatprep.subr.bf16.mxu0 0
  %140 = vmatpush1.bf16.msra.mxu0 0
  %141 = vmatprep.subr.bf16.mxu0 0
  %142 = vmatpush1.bf16.msra.mxu0 0
  %143 = vmatprep.subr.bf16.mxu0 0
  %144 = vmatpush1.bf16.msra.mxu0 0
  %145 = vmatprep.mubr.bf16.mxu0 0
  %146 = vmatmul.mubr.bf16.gmra.mrb[0].mxu0 %v108
  %v147 = vpop.f32.mrb[0].mxu0
  %v148 = vadd.f32 %v86, %v147
  %v149 = vpop.f32.mrb[0].mxu0
  %v150 = vpop.f32.mrb[0].mxu0
  %v151 = vadd.f32 %v89, %v150
  %v152 = vpop.f32.mrb[0].mxu0
  %153 = vdwg.mxu0
  %v154 = vld [vmem:[%s6] sm:$0x3]
  %v155 = vlaneseq
  %v156 = vshrl.u32 %v155, 7
  %v157 = vsub.s32 0, %v156
  %v158 = vrot.slane %v154, %v157
  %v159 = vadd.f32 %v148, %v158
  %v160 = vadd.f32 %v151, %v158
  %v161 = vmax.f32 %v159, 0.0
  %v162 = vmax.f32 %v160, 0.0
  %v163 = vpack.c.bf16 %v162, %v161
  %v164 = vld [vmem:[%s4] sm:$0xf]
  %v165 = vld [vmem:[%s4 + $0x4] sm:$0xf]
  %v166 = vld [vmem:[%s4 + $0x8] sm:$0xf]
  %v167 = vld [vmem:[%s4 + $0xc] sm:$0xf]
  %v168 = vld [vmem:[%s4 + $0x10] sm:$0xf]
  %v169 = vld [vmem:[%s4 + $0x14] sm:$0xf]
  %v170 = vld [vmem:[%s4 + $0x18] sm:$0xf]
  %v171 = vld [vmem:[%s4 + $0x1c] sm:$0xf]
  %v172 = vld [vmem:[%s4 + $0x20] sm:$0xf]
  %v173 = vld [vmem:[%s4 + $0x24] sm:$0xf]
  %v174 = vld [vmem:[%s4 + $0x28] sm:$0xf]
  %v175 = vld [vmem:[%s4 + $0x2c] sm:$0xf]
  %v176 = vld [vmem:[%s4 + $0x30] sm:$0xf]
  %v177 = vld [vmem:[%s4 + $0x34] sm:$0xf]
  %v178 = vld [vmem:[%s4 + $0x38] sm:$0xf]
  %v179 = vld [vmem:[%s4 + $0x3c] sm:$0xf]
  %v180 = vlaneseq
  %v181 = vshrl.u32 %v180, 7
  %v182 = vsub.s32 1, %v181
  %v183 = vrot.slane %v154, %v182
  %v200 = vunpack.c.l.b16 %v164
  %v201 = vunpack.c.l.b16 %v165
  %v202 = vunpack.c.l.b16 %v166
  %v203 = vunpack.c.l.b16 %v167
  %v204 = vunpack.c.l.b16 %v168
  %v205 = vunpack.c.l.b16 %v169
  %v206 = vunpack.c.l.b16 %v170
  %v207 = vunpack.c.l.b16 %v171
  %v208 = vunpack.c.l.b16 %v172
  %v209 = vunpack.c.l.b16 %v173
  %v210 = vunpack.c.l.b16 %v174
  %v211 = vunpack.c.l.b16 %v175
  %v212 = vunpack.c.l.b16 %v176
  %v213 = vunpack.c.l.b16 %v177
  %v214 = vunpack.c.l.b16 %v178
  %v215 = vunpack.c.l.b16 %v179
  %v216 = vpack.c.b16 %v201, %v200
  %v217 = vpack.c.b16 %v203, %v202
  %v218 = vpack.c.b16 %v205, %v204
  %v219 = vpack.c.b16 %v207, %v206
  %v220 = vpack.c.b16 %v209, %v208
  %v221 = vpack.c.b16 %v211, %v210
  %v222 = vpack.c.b16 %v213, %v212
  %v223 = vpack.c.b16 %v215, %v214
  %232 = vmatprep.subr.bf16.mxu0 0
  %233 = vmatpush1.bf16.msra.mxu0 %v216
  %234 = vmatprep.subr.bf16.mxu0 0
  %235 = vmatpush1.bf16.msra.mxu0 %v217
  %236 = vmatprep.subr.bf16.mxu0 0
  %237 = vmatpush1.bf16.msra.mxu0 %v218
  %238 = vmatprep.subr.bf16.mxu0 0
  %239 = vmatpush1.bf16.msra.mxu0 %v219
  %240 = vmatprep.subr.bf16.mxu0 0
  %241 = vmatpush1.bf16.msra.mxu0 %v220
  %242 = vmatprep.subr.bf16.mxu0 0
  %243 = vmatpush1.bf16.msra.mxu0 %v221
  %244 = vmatprep.subr.bf16.mxu0 0
  %245 = vmatpush1.bf16.msra.mxu0 %v222
  %246 = vmatprep.subr.bf16.mxu0 0
  %247 = vmatpush1.bf16.msra.mxu0 %v223
  %248 = vmatprep.subr.bf16.mxu0 0
  %249 = vmatpush1.bf16.msra.mxu0 0
  %250 = vmatprep.subr.bf16.mxu0 0
  %251 = vmatpush1.bf16.msra.mxu0 0
  %252 = vmatprep.subr.bf16.mxu0 0
  %253 = vmatpush1.bf16.msra.mxu0 0
  %254 = vmatprep.subr.bf16.mxu0 0
  %255 = vmatpush1.bf16.msra.mxu0 0
  %256 = vmatprep.subr.bf16.mxu0 0
  %257 = vmatpush1.bf16.msra.mxu0 0
  %258 = vmatprep.subr.bf16.mxu0 0
  %259 = vmatpush1.bf16.msra.mxu0 0
  %260 = vmatprep.subr.bf16.mxu0 0
  %261 = vmatpush1.bf16.msra.mxu0 0
  %262 = vmatprep.subr.bf16.mxu0 0
  %263 = vmatpush1.bf16.msra.mxu0 0
  %264 = vmatprep.mubr.bf16.mxu0 0
  %265 = vmatmul.mubr.bf16.gmra.mrb[0].mxu0 %v163
  %v266 = vpop.f32.mrb[0].mxu0
  %v267 = vadd.f32 %v183, %v266
  %v268 = vpop.f32.mrb[0].mxu0
  %v269 = vpop.f32.mrb[0].mxu0
  %v270 = vadd.f32 %v183, %v269
  %v271 = vpop.f32.mrb[0].mxu0
  %272 = vdwg.mxu0
  %v273 = vmax.f32 %v267, 0.0
  %v274 = vmax.f32 %v270, 0.0
  %v275 = vpack.c.bf16 %v274, %v273
  %v276 = vld [vmem:[%s5] sm:$0xf]
  %v277 = vld [vmem:[%s5 + $0x4] sm:$0xf]
  %v278 = vld [vmem:[%s5 + $0x8] sm:$0xf]
  %v279 = vld [vmem:[%s5 + $0xc] sm:$0xf]
  %v280 = vld [vmem:[%s5 + $0x10] sm:$0xf]
  %v281 = vld [vmem:[%s5 + $0x14] sm:$0xf]
  %v282 = vld [vmem:[%s5 + $0x18] sm:$0xf]
  %v283 = vld [vmem:[%s5 + $0x1c] sm:$0xf]
  %v284 = vld [vmem:[%s5 + $0x20] sm:$0xf]
  %v285 = vld [vmem:[%s5 + $0x24] sm:$0xf]
  %v286 = vld [vmem:[%s5 + $0x28] sm:$0xf]
  %v287 = vld [vmem:[%s5 + $0x2c] sm:$0xf]
  %v288 = vld [vmem:[%s5 + $0x30] sm:$0xf]
  %v289 = vld [vmem:[%s5 + $0x34] sm:$0xf]
  %v290 = vld [vmem:[%s5 + $0x38] sm:$0xf]
  %v291 = vld [vmem:[%s5 + $0x3c] sm:$0xf]
  %v292 = vld [vmem:[%s7] sm:$0x1]
  %v294 = vlaneseq
  %v295 = vshrl.u32 %v294, 7
  %v296 = vsub.s32 0, %v295
  %v297 = vrot.slane %v292, %v296
  %v315 = vunpack.c.l.b16 %v276
  %v316 = vunpack.c.l.b16 %v277
  %v317 = vunpack.c.l.b16 %v278
  %v318 = vunpack.c.l.b16 %v279
  %v319 = vunpack.c.l.b16 %v280
  %v320 = vunpack.c.l.b16 %v281
  %v321 = vunpack.c.l.b16 %v282
  %v322 = vunpack.c.l.b16 %v283
  %v323 = vunpack.c.l.b16 %v284
  %v324 = vunpack.c.l.b16 %v285
  %v325 = vunpack.c.l.b16 %v286
  %v326 = vunpack.c.l.b16 %v287
  %v327 = vunpack.c.l.b16 %v288
  %v328 = vunpack.c.l.b16 %v289
  %v329 = vunpack.c.l.b16 %v290
  %v330 = vunpack.c.l.b16 %v291
  %v331 = vpack.c.b16 %v316, %v315
  %v332 = vpack.c.b16 %v318, %v317
  %v333 = vpack.c.b16 %v320, %v319
  %v334 = vpack.c.b16 %v322, %v321
  %v335 = vpack.c.b16 %v324, %v323
  %v336 = vpack.c.b16 %v326, %v325
  %v337 = vpack.c.b16 %v328, %v327
  %v338 = vpack.c.b16 %v330, %v329
  %347 = vmatprep.subr.bf16.mxu0 0
  %348 = vmatpush1.bf16.msra.mxu0 %v331
  %349 = vmatprep.subr.bf16.mxu0 0
  %350 = vmatpush1.bf16.msra.mxu0 %v332
  %351 = vmatprep.subr.bf16.mxu0 0
  %352 = vmatpush1.bf16.msra.mxu0 %v333
  %353 = vmatprep.subr.bf16.mxu0 0
  %354 = vmatpush1.bf16.msra.mxu0 %v334
  %355 = vmatprep.subr.bf16.mxu0 0
  %356 = vmatpush1.bf16.msra.mxu0 %v335
  %357 = vmatprep.subr.bf16.mxu0 0
  %358 = vmatpush1.bf16.msra.mxu0 %v336
  %359 = vmatprep.subr.bf16.mxu0 0
  %360 = vmatpush1.bf16.msra.mxu0 %v337
  %361 = vmatprep.subr.bf16.mxu0 0
  %362 = vmatpush1.bf16.msra.mxu0 %v338
  %363 = vmatprep.subr.bf16.mxu0 0
  %364 = vmatpush1.bf16.msra.mxu0 0
  %365 = vmatprep.subr.bf16.mxu0 0
  %366 = vmatpush1.bf16.msra.mxu0 0
  %367 = vmatprep.subr.bf16.mxu0 0
  %368 = vmatpush1.bf16.msra.mxu0 0
  %369 = vmatprep.subr.bf16.mxu0 0
  %370 = vmatpush1.bf16.msra.mxu0 0
  %371 = vmatprep.subr.bf16.mxu0 0
  %372 = vmatpush1.bf16.msra.mxu0 0
  %373 = vmatprep.subr.bf16.mxu0 0
  %374 = vmatpush1.bf16.msra.mxu0 0
  %375 = vmatprep.subr.bf16.mxu0 0
  %376 = vmatpush1.bf16.msra.mxu0 0
  %377 = vmatprep.subr.bf16.mxu0 0
  %378 = vmatpush1.bf16.msra.mxu0 0
  %379 = vmatprep.mubr.bf16.mxu0 0
  %380 = vmatmul.mubr.bf16.gmra.mrb[0].mxu0 %v275
  %v381 = vpop.f32.mrb[0].mxu0
  %v382 = vadd.f32 %v297, %v381
  %v383 = vpop.f32.mrb[0].mxu0
  %v384 = vpop.f32.mrb[0].mxu0
  %v385 = vadd.f32 %v297, %v384
  %v386 = vpop.f32.mrb[0].mxu0
  %387 = vdwg.mxu0
  %388 = vst.msk [vmem:[%s8] sm:$0xff] %vm43, %v382
  %389 = vst.msk [vmem:[%s8 + $0x8] sm:$0xff] %vm43, %v385
  // Predicated region
  $region34: #{tpu_custom_call.1} parent=0 // pred_check
    _
  $region35: #{tpu_custom_call.1} parent=0 // pred_check_branch
    %391 = sbr.rel (0) target = $region37
  $region36: #{tpu_custom_call.1} parent=0 // pred_region
    _
  $region37: #{tpu_custom_call.1} parent=0 // pred_fallthru
    _
  // Predicated region
  $region38: #{tpu_custom_call.1} parent=0 // pred_check
    _
  $region39: #{tpu_custom_call.1} parent=0 // pred_check_branch
    %393 = sbr.rel (0) target = $region41
  $region40: #{tpu_custom_call.1} parent=0 // pred_region
    _
  $region41: #{tpu_custom_call.1} parent=0 // pred_fallthru
    _

// kernel: tpu_custom_call.1
$region0: #{tpu_custom_call.1}
  #allocation0 [shape = 'u32[]', space=smem, size = 0x4, offset = 0x4, fixed_abs, tag = 'smem constant byte address 0x4 - core index']
  #allocation1 [shape = 'u32[144,128]{1,0:T(1,128)}', space=vmem, size = 0x12000, scoped, tag = 'internal scratch']
  %s0 = inlined_call_operand.vmem [shape: bf16[16,24], index: 0, kind: input, shape index: {}]
  %s1 = inlined_call_operand.vmem [shape: bf16[16,8], index: 1, kind: input, shape index: {}]
  %s2 = inlined_call_operand.vmem [shape: bf16[24,128], index: 2, kind: input, shape index: {}]
  %s3 = inlined_call_operand.vmem [shape: bf16[8,128], index: 3, kind: input, shape index: {}]
  %s4 = inlined_call_operand.vmem [shape: bf16[128,128], index: 4, kind: input, shape index: {}]
  %s5 = inlined_call_operand.vmem [shape: bf16[128,8], index: 5, kind: input, shape index: {}]
  %s6 = inlined_call_operand.vmem [shape: f32[2,128], index: 6, kind: input, shape index: {}]
  %s7 = inlined_call_operand.vmem [shape: f32[1,8], index: 7, kind: input, shape index: {}]
  %s8 = inlined_call_operand.vmem [shape: f32[16,8], index: 8, kind: output, shape index: {}]
  %s9 = sld [smem:[#allocation0]]
  $region42: #{tpu_custom_call.1} parent=0
    _
  %s11 = ssub.s32 1, %s9
  %s12 = scalar_select 0, %s11, %s9
  // Predicated region
  $region2: #{tpu_custom_call.1} parent=0 // pred_check
    _
  $region3: #{tpu_custom_call.1} parent=0 // pred_check_branch
    %14 = sbr.rel (0) target = $region5
  $region4: #{tpu_custom_call.1} parent=0 // pred_region
    _
  $region5: #{tpu_custom_call.1} parent=0 // pred_fallthru
    _
  // Predicated region
  $region6: #{tpu_custom_call.1} parent=0 // pred_check
    _
  $region7: #{tpu_custom_call.1} parent=0 // pred_check_branch
    %16 = sbr.rel (0) target = $region9
  $region8: #{tpu_custom_call.1} parent=0 // pred_region
    _
  $region9: #{tpu_custom_call.1} parent=0 // pred_fallthru
    _
  // Predicated region
  $region10: #{tpu_custom_call.1} parent=0 // pred_check
    _
  $region11: #{tpu_custom_call.1} parent=0 // pred_check_branch
    %18 = sbr.rel (0) target = $region13
  $region12: #{tpu_custom_call.1} parent=0 // pred_region
    _
  $region13: #{tpu_custom_call.1} parent=0 // pred_fallthru
    _
  // Predicated region
  $region14: #{tpu_custom_call.1} parent=0 // pred_check
    _
  $region15: #{tpu_custom_call.1} parent=0 // pred_check_branch
    %20 = sbr.rel (0) target = $region17
  $region16: #{tpu_custom_call.1} parent=0 // pred_region
    _
  $region17: #{tpu_custom_call.1} parent=0 // pred_fallthru
    _
  // Predicated region
  $region18: #{tpu_custom_call.1} parent=0 // pred_check
    _
  $region19: #{tpu_custom_call.1} parent=0 // pred_check_branch
    %22 = sbr.rel (0) target = $region21
  $region20: #{tpu_custom_call.1} parent=0 // pred_region
    _
  $region21: #{tpu_custom_call.1} parent=0 // pred_fallthru
    _
  // Predicated region
  $region22: #{tpu_custom_call.1} parent=0 // pred_check
    _
  $region23: #{tpu_custom_call.1} parent=0 // pred_check_branch
    %24 = sbr.rel (0) target = $region25
  $region24: #{tpu_custom_call.1} parent=0 // pred_region
    _
  $region25: #{tpu_custom_call.1} parent=0 // pred_fallthru
    _
  // Predicated region
  $region26: #{tpu_custom_call.1} parent=0 // pred_check
    _
  $region27: #{tpu_custom_call.1} parent=0 // pred_check_branch
    %26 = sbr.rel (0) target = $region29
  $region28: #{tpu_custom_call.1} parent=0 // pred_region
    _
  $region29: #{tpu_custom_call.1} parent=0 // pred_fallthru
    _
  // Predicated region
  $region30: #{tpu_custom_call.1} parent=0 // pred_check
    _
  $region31: #{tpu_custom_call.1} parent=0 // pred_check_branch
    %28 = sbr.rel (0) target = $region33
  $region32: #{tpu_custom_call.1} parent=0 // pred_region
    _
  $region33: #{tpu_custom_call.1} parent=0 // pred_fallthru
    _
  %v30 = vld [vmem:[%s0] sm:$0xf]
  %v31 = vld [vmem:[%s0 + $0x4] sm:$0xf]
  %v32 = vld [vmem:[%s2] sm:$0xf]
  %v33 = vld [vmem:[%s2 + $0x4] sm:$0xf]
  %v34 = vld [vmem:[%s2 + $0x8] sm:$0xf]
  %v35 = vld [vmem:[%s1] sm:$0xf]
  %v36 = vld [vmem:[%s1 + $0x4] sm:$0xf]
  %v37 = vld [vmem:[%s3] sm:$0xf]
  %v40 = vunpack.c.l.b16 %v35
  %v41 = vunpack.c.l.b16 %v36
  %v42 = vpack.c.b16 %v41, %v40
  %vm43 = vcmask 64512
  %v45 = vsel %vm43, %v42, 0
  %vm47 = vcmask 1043456
  %v49 = vsel %vm47, %v37, 0
  %51 = vmatprep.subr.bf16.mxu0 0
  %52 = vmatpush1.bf16.msra.mxu0 %v49
  %53 = vmatprep.subr.bf16.mxu0 0
  %54 = vmatpush1.bf16.msra.mxu0 0
  %55 = vmatprep.subr.bf16.mxu0 0
  %56 = vmatpush1.bf16.msra.mxu0 0
  %57 = vmatprep.subr.bf16.mxu0 0
  %58 = vmatpush1.bf16.msra.mxu0 0
  %59 = vmatprep.subr.bf16.mxu0 0
  %60 = vmatpush1.bf16.msra.mxu0 0
  %61 = vmatprep.subr.bf16.mxu0 0
  %62 = vmatpush1.bf16.msra.mxu0 0
  %63 = vmatprep.subr.bf16.mxu0 0
  %64 = vmatpush1.bf16.msra.mxu0 0
  %65 = vmatprep.subr.bf16.mxu0 0
  %66 = vmatpush1.bf16.msra.mxu0 0
  %67 = vmatprep.subr.bf16.mxu0 0
  %68 = vmatpush1.bf16.msra.mxu0 0
  %69 = vmatprep.subr.bf16.mxu0 0
  %70 = vmatpush1.bf16.msra.mxu0 0
  %71 = vmatprep.subr.bf16.mxu0 0
  %72 = vmatpush1.bf16.msra.mxu0 0
  %73 = vmatprep.subr.bf16.mxu0 0
  %74 = vmatpush1.bf16.msra.mxu0 0
  %75 = vmatprep.subr.bf16.mxu0 0
  %76 = vmatpush1.bf16.msra.mxu0 0
  %77 = vmatprep.subr.bf16.mxu0 0
  %78 = vmatpush1.bf16.msra.mxu0 0
  %79 = vmatprep.subr.bf16.mxu0 0
  %80 = vmatpush1.bf16.msra.mxu0 0
  %81 = vmatprep.subr.bf16.mxu0 0
  %82 = vmatpush1.bf16.msra.mxu0 0
  %83 = vmatprep.mubr.bf16.mxu0 0
  %84 = vmatmul.mubr.bf16.gmra.mrb[0].mxu0 %v45
  %v85 = vpop.f32.mrb[0].mxu0
  %v86 = vadd.f32 0.0, %v85
  %v87 = vpop.f32.mrb[0].mxu0
  %v88 = vpop.f32.mrb[0].mxu0
  %v89 = vadd.f32 0.0, %v88
  %v90 = vpop.f32.mrb[0].mxu0
  %91 = vdwg.mxu0
  %v94 = vunpack.c.l.b16 %v30
  %v95 = vunpack.c.l.b16 %v31
  %v96 = vpack.c.b16 %v95, %v94
  %v100 = vunpack.c.l.b16 %v32
  %v101 = vunpack.c.l.b16 %v33
  %v102 = vunpack.c.l.b16 %v34
  %v103 = vpack.c.b16 %v101, %v100
  %v104 = vpack.c.b16 %v102, %v102
  %vm106 = vcmask 195584
  %v108 = vsel %vm106, %v96, 0
  %v111 = vsel %vm47, %v104, 0
  %113 = vmatprep.subr.bf16.mxu0 0
  %114 = vmatpush1.bf16.msra.mxu0 %v103
  %115 = vmatprep.subr.bf16.mxu0 0
  %116 = vmatpush1.bf16.msra.mxu0 %v111
  %117 = vmatprep.subr.bf16.mxu0 0
  %118 = vmatpush1.bf16.msra.mxu0 0
  %119 = vmatprep.subr.bf16.mxu0 0
  %120 = vmatpush1.bf16.msra.mxu0 0
  %121 = vmatprep.subr.bf16.mxu0 0
  %122 = vmatpush1.bf16.msra.mxu0 0
  %123 = vmatprep.subr.bf16.mxu0 0
  %124 = vmatpush1.bf16.msra.mxu0 0
  %125 = vmatprep.subr.bf16.mxu0 0
  %126 = vmatpush1.bf16.msra.mxu0 0
  %127 = vmatprep.subr.bf16.mxu0 0
  %128 = vmatpush1.bf16.msra.mxu0 0
  %129 = vmatprep.subr.bf16.mxu0 0
  %130 = vmatpush1.bf16.msra.mxu0 0
  %131 = vmatprep.subr.bf16.mxu0 0
  %132 = vmatpush1.bf16.msra.mxu0 0
  %133 = vmatprep.subr.bf16.mxu0 0
  %134 = vmatpush1.bf16.msra.mxu0 0
  %135 = vmatprep.subr.bf16.mxu0 0
  %136 = vmatpush1.bf16.msra.mxu0 0
  %137 = vmatprep.subr.bf16.mxu0 0
  %138 = vmatpush1.bf16.msra.mxu0 0
  %139 = vmatprep.subr.bf16.mxu0 0
  %140 = vmatpush1.bf16.msra.mxu0 0
  %141 = vmatprep.subr.bf16.mxu0 0
  %142 = vmatpush1.bf16.msra.mxu0 0
  %143 = vmatprep.subr.bf16.mxu0 0
  %144 = vmatpush1.bf16.msra.mxu0 0
  %145 = vmatprep.mubr.bf16.mxu0 0
  %146 = vmatmul.mubr.bf16.gmra.mrb[0].mxu0 %v108
  %v147 = vpop.f32.mrb[0].mxu0
  %v148 = vadd.f32 %v86, %v147
  %v149 = vpop.f32.mrb[0].mxu0
  %v150 = vpop.f32.mrb[0].mxu0
  %v151 = vadd.f32 %v89, %v150
  %v152 = vpop.f32.mrb[0].mxu0
  %153 = vdwg.mxu0
  %v154 = vld [vmem:[%s6] sm:$0x3]
  %v155 = vlaneseq
  %v156 = vshrl.u32 %v155, 7
  %v157 = vsub.s32 0, %v156
  %v158 = vrot.slane %v154, %v157
  %v159 = vadd.f32 %v148, %v158
  %v160 = vadd.f32 %v151, %v158
  %v161 = vmax.f32 %v159, 0.0
  %v162 = vmax.f32 %v160, 0.0
  %v163 = vpack.c.bf16 %v162, %v161
  %v164 = vld [vmem:[%s4] sm:$0xf]
  %v165 = vld [vmem:[%s4 + $0x4] sm:$0xf]
  %v166 = vld [vmem:[%s4 + $0x8] sm:$0xf]
  %v167 = vld [vmem:[%s4 + $0xc] sm:$0xf]
  %v168 = vld [vmem:[%s4 + $0x10] sm:$0xf]
  %v169 = vld [vmem:[%s4 + $0x14] sm:$0xf]
  %v170 = vld [vmem:[%s4 + $0x18] sm:$0xf]
  %v171 = vld [vmem:[%s4 + $0x1c] sm:$0xf]
  %v172 = vld [vmem:[%s4 + $0x20] sm:$0xf]
  %v173 = vld [vmem:[%s4 + $0x24] sm:$0xf]
  %v174 = vld [vmem:[%s4 + $0x28] sm:$0xf]
  %v175 = vld [vmem:[%s4 + $0x2c] sm:$0xf]
  %v176 = vld [vmem:[%s4 + $0x30] sm:$0xf]
  %v177 = vld [vmem:[%s4 + $0x34] sm:$0xf]
  %v178 = vld [vmem:[%s4 + $0x38] sm:$0xf]
  %v179 = vld [vmem:[%s4 + $0x3c] sm:$0xf]
  %v180 = vlaneseq
  %v181 = vshrl.u32 %v180, 7
  %v182 = vsub.s32 1, %v181
  %v183 = vrot.slane %v154, %v182
  %v200 = vunpack.c.l.b16 %v164
  %v201 = vunpack.c.l.b16 %v165
  %v202 = vunpack.c.l.b16 %v166
  %v203 = vunpack.c.l.b16 %v167
  %v204 = vunpack.c.l.b16 %v168
  %v205 = vunpack.c.l.b16 %v169
  %v206 = vunpack.c.l.b16 %v170
  %v207 = vunpack.c.l.b16 %v171
  %v208 = vunpack.c.l.b16 %v172
  %v209 = vunpack.c.l.b16 %v173
  %v210 = vunpack.c.l.b16 %v174
  %v211 = vunpack.c.l.b16 %v175
  %v212 = vunpack.c.l.b16 %v176
  %v213 = vunpack.c.l.b16 %v177
  %v214 = vunpack.c.l.b16 %v178
  %v215 = vunpack.c.l.b16 %v179
  %v216 = vpack.c.b16 %v201, %v200
  %v217 = vpack.c.b16 %v203, %v202
  %v218 = vpack.c.b16 %v205, %v204
  %v219 = vpack.c.b16 %v207, %v206
  %v220 = vpack.c.b16 %v209, %v208
  %v221 = vpack.c.b16 %v211, %v210
  %v222 = vpack.c.b16 %v213, %v212
  %v223 = vpack.c.b16 %v215, %v214
  %232 = vmatprep.subr.bf16.mxu0 0
  %233 = vmatpush1.bf16.msra.mxu0 %v216
  %234 = vmatprep.subr.bf16.mxu0 0
  %235 = vmatpush1.bf16.msra.mxu0 %v217
  %236 = vmatprep.subr.bf16.mxu0 0
  %237 = vmatpush1.bf16.msra.mxu0 %v218
  %238 = vmatprep.subr.bf16.mxu0 0
  %239 = vmatpush1.bf16.msra.mxu0 %v219
  %240 = vmatprep.subr.bf16.mxu0 0
  %241 = vmatpush1.bf16.msra.mxu0 %v220
  %242 = vmatprep.subr.bf16.mxu0 0
  %243 = vmatpush1.bf16.msra.mxu0 %v221
  %244 = vmatprep.subr.bf16.mxu0 0
  %245 = vmatpush1.bf16.msra.mxu0 %v222
  %246 = vmatprep.subr.bf16.mxu0 0
  %247 = vmatpush1.bf16.msra.mxu0 %v223
  %248 = vmatprep.subr.bf16.mxu0 0
  %249 = vmatpush1.bf16.msra.mxu0 0
  %250 = vmatprep.subr.bf16.mxu0 0
  %251 = vmatpush1.bf16.msra.mxu0 0
  %252 = vmatprep.subr.bf16.mxu0 0
  %253 = vmatpush1.bf16.msra.mxu0 0
  %254 = vmatprep.subr.bf16.mxu0 0
  %255 = vmatpush1.bf16.msra.mxu0 0
  %256 = vmatprep.subr.bf16.mxu0 0
  %257 = vmatpush1.bf16.msra.mxu0 0
  %258 = vmatprep.subr.bf16.mxu0 0
  %259 = vmatpush1.bf16.msra.mxu0 0
  %260 = vmatprep.subr.bf16.mxu0 0
  %261 = vmatpush1.bf16.msra.mxu0 0
  %262 = vmatprep.subr.bf16.mxu0 0
  %263 = vmatpush1.bf16.msra.mxu0 0
  %264 = vmatprep.mubr.bf16.mxu0 0
  %265 = vmatmul.mubr.bf16.gmra.mrb[0].mxu0 %v163
  %v266 = vpop.f32.mrb[0].mxu0
  %v267 = vadd.f32 %v183, %v266
  %v268 = vpop.f32.mrb[0].mxu0
  %v269 = vpop.f32.mrb[0].mxu0
  %v270 = vadd.f32 %v183, %v269
  %v271 = vpop.f32.mrb[0].mxu0
  %272 = vdwg.mxu0
  %v273 = vmax.f32 %v267, 0.0
  %v274 = vmax.f32 %v270, 0.0
  %v275 = vpack.c.bf16 %v274, %v273
  %v276 = vld [vmem:[%s5] sm:$0xf]
  %v277 = vld [vmem:[%s5 + $0x4] sm:$0xf]
  %v278 = vld [vmem:[%s5 + $0x8] sm:$0xf]
  %v279 = vld [vmem:[%s5 + $0xc] sm:$0xf]
  %v280 = vld [vmem:[%s5 + $0x10] sm:$0xf]
  %v281 = vld [vmem:[%s5 + $0x14] sm:$0xf]
  %v282 = vld [vmem:[%s5 + $0x18] sm:$0xf]
  %v283 = vld [vmem:[%s5 + $0x1c] sm:$0xf]
  %v284 = vld [vmem:[%s5 + $0x20] sm:$0xf]
  %v285 = vld [vmem:[%s5 + $0x24] sm:$0xf]
  %v286 = vld [vmem:[%s5 + $0x28] sm:$0xf]
  %v287 = vld [vmem:[%s5 + $0x2c] sm:$0xf]
  %v288 = vld [vmem:[%s5 + $0x30] sm:$0xf]
  %v289 = vld [vmem:[%s5 + $0x34] sm:$0xf]
  %v290 = vld [vmem:[%s5 + $0x38] sm:$0xf]
  %v291 = vld [vmem:[%s5 + $0x3c] sm:$0xf]
  %v292 = vld [vmem:[%s7] sm:$0x1]
  %v294 = vlaneseq
  %v295 = vshrl.u32 %v294, 7
  %v296 = vsub.s32 0, %v295
  %v297 = vrot.slane %v292, %v296
  %v315 = vunpack.c.l.b16 %v276
  %v316 = vunpack.c.l.b16 %v277
  %v317 = vunpack.c.l.b16 %v278
  %v318 = vunpack.c.l.b16 %v279
  %v319 = vunpack.c.l.b16 %v280
  %v320 = vunpack.c.l.b16 %v281
  %v321 = vunpack.c.l.b16 %v282
  %v322 = vunpack.c.l.b16 %v283
  %v323 = vunpack.c.l.b16 %v284
  %v324 = vunpack.c.l.b16 %v285
  %v325 = vunpack.c.l.b16 %v286
  %v326 = vunpack.c.l.b16 %v287
  %v327 = vunpack.c.l.b16 %v288
  %v328 = vunpack.c.l.b16 %v289
  %v329 = vunpack.c.l.b16 %v290
  %v330 = vunpack.c.l.b16 %v291
  %v331 = vpack.c.b16 %v316, %v315
  %v332 = vpack.c.b16 %v318, %v317
  %v333 = vpack.c.b16 %v320, %v319
  %v334 = vpack.c.b16 %v322, %v321
  %v335 = vpack.c.b16 %v324, %v323
  %v336 = vpack.c.b16 %v326, %v325
  %v337 = vpack.c.b16 %v328, %v327
  %v338 = vpack.c.b16 %v330, %v329
  %347 = vmatprep.subr.bf16.mxu0 0
  %348 = vmatpush1.bf16.msra.mxu0 %v331
  %349 = vmatprep.subr.bf16.mxu0 0
  %350 = vmatpush1.bf16.msra.mxu0 %v332
  %351 = vmatprep.subr.bf16.mxu0 0
  %352 = vmatpush1.bf16.msra.mxu0 %v333
  %353 = vmatprep.subr.bf16.mxu0 0
  %354 = vmatpush1.bf16.msra.mxu0 %v334
  %355 = vmatprep.subr.bf16.mxu0 0
  %356 = vmatpush1.bf16.msra.mxu0 %v335
  %357 = vmatprep.subr.bf16.mxu0 0
  %358 = vmatpush1.bf16.msra.mxu0 %v336
  %359 = vmatprep.subr.bf16.mxu0 0
  %360 = vmatpush1.bf16.msra.mxu0 %v337
  %361 = vmatprep.subr.bf16.mxu0 0
  %362 = vmatpush1.bf16.msra.mxu0 %v338
  %363 = vmatprep.subr.bf16.mxu0 0
  %364 = vmatpush1.bf16.msra.mxu0 0
  %365 = vmatprep.subr.bf16.mxu0 0
  %366 = vmatpush1.bf16.msra.mxu0 0
  %367 = vmatprep.subr.bf16.mxu0 0
  %368 = vmatpush1.bf16.msra.mxu0 0
  %369 = vmatprep.subr.bf16.mxu0 0
  %370 = vmatpush1.bf16.msra.mxu0 0
  %371 = vmatprep.subr.bf16.mxu0 0
  %372 = vmatpush1.bf16.msra.mxu0 0
  %373 = vmatprep.subr.bf16.mxu0 0
  %374 = vmatpush1.bf16.msra.mxu0 0
  %375 = vmatprep.subr.bf16.mxu0 0
  %376 = vmatpush1.bf16.msra.mxu0 0
  %377 = vmatprep.subr.bf16.mxu0 0
  %378 = vmatpush1.bf16.msra.mxu0 0
  %379 = vmatprep.mubr.bf16.mxu0 0
  %380 = vmatmul.mubr.bf16.gmra.mrb[0].mxu0 %v275
  %v381 = vpop.f32.mrb[0].mxu0
  %v382 = vadd.f32 %v297, %v381
  %v383 = vpop.f32.mrb[0].mxu0
  %v384 = vpop.f32.mrb[0].mxu0
  %v385 = vadd.f32 %v297, %v384
  %v386 = vpop.f32.mrb[0].mxu0
  %387 = vdwg.mxu0
  %388 = vst.msk [vmem:[%s8] sm:$0xff] %vm43, %v382
  %389 = vst.msk [vmem:[%s8 + $0x8] sm:$0xff] %vm43, %v385
  // Predicated region
  $region34: #{tpu_custom_call.1} parent=0 // pred_check
    _
  $region35: #{tpu_custom_call.1} parent=0 // pred_check_branch
    %391 = sbr.rel (0) target = $region37
  $region36: #{tpu_custom_call.1} parent=0 // pred_region
    _
  $region37: #{tpu_custom_call.1} parent=0 // pred_fallthru
    _
  // Predicated region
  $region38: #{tpu_custom_call.1} parent=0 // pred_check
    _
  $region39: #{tpu_custom_call.1} parent=0 // pred_check_branch
    %393 = sbr.rel (0) target = $region41
  $region40: #{tpu_custom_call.1} parent=0 // pred_region
    _
  $region41: #{tpu_custom_call.1} parent=0 // pred_fallthru
    _

</llo_original>
